<compile_context>
chip_gen: v7x
topology: tpu7x:2x2x1
jax: 0.10.0
libtpu: 0.0.40
codegen_flags: <defaults>
</compile_context>

<pallas_src>
import functools

import jax
import jax.numpy as jnp
from jax.experimental import pallas as pl
from jax.experimental.pallas import tpu as pltpu


# ---------------------------------------------------------------------------
# Kernels
# ---------------------------------------------------------------------------

def _mlp_logits(x_ref, w1_ref, b1_ref, w2_ref, b2_ref, w3_ref, b3_ref,
                w4_ref, b4_ref):
    """Shared MLP body: f32 x block -> f32 logits (bf16 MXU operands, f32 acc)."""
    # In-kernel f32 -> bf16 cast (review: avoid an extra HBM pass in the wrapper).
    x = x_ref[...].astype(jnp.bfloat16)

    h = jnp.dot(x, w1_ref[...], preferred_element_type=jnp.float32) + b1_ref[...]
    h = jnp.maximum(h, 0.0).astype(jnp.bfloat16)

    h = jnp.dot(h, w2_ref[...], preferred_element_type=jnp.float32) + b2_ref[...]
    h = jnp.maximum(h, 0.0).astype(jnp.bfloat16)

    h = jnp.dot(h, w3_ref[...], preferred_element_type=jnp.float32) + b3_ref[...]
    h = jnp.maximum(h, 0.0).astype(jnp.bfloat16)

    return jnp.dot(h, w4_ref[...], preferred_element_type=jnp.float32) + b4_ref[...]


def policy_mlp_softmax_kernel(x_ref, w1_ref, b1_ref, w2_ref, b2_ref, w3_ref,
                              b3_ref, w4_ref, b4_ref, o_ref):
    """Fused single-block path: MLP + softmax over axis 0 (batch), one launch."""
    logits = _mlp_logits(x_ref, w1_ref, b1_ref, w2_ref, b2_ref, w3_ref, b3_ref,
                         w4_ref, b4_ref)
    m = jnp.max(logits, axis=0, keepdims=True)
    e = jnp.exp(logits - m)
    s = jnp.sum(e, axis=0, keepdims=True)
    o_ref[...] = (e / s).astype(o_ref.dtype)


def policy_mlp_kernel(x_ref, w1_ref, b1_ref, w2_ref, b2_ref, w3_ref, b3_ref,
                      w4_ref, b4_ref, o_ref):
    """Batch-tiled path: MLP only; softmax(dim=0) handled by the two-pass stage."""
    o_ref[...] = _mlp_logits(x_ref, w1_ref, b1_ref, w2_ref, b2_ref, w3_ref,
                             b3_ref, w4_ref, b4_ref).astype(o_ref.dtype)


def softmax_colstats_kernel(z_ref, m_ref, l_ref, *, num_rows, tile_b):
    """Pass 1 of the tiled softmax(dim=0): online per-column max / exp-sum."""
    i = pl.program_id(0)

    @pl.when(i == 0)
    def _():
        m_ref[...] = jnp.full(m_ref.shape, -jnp.inf, dtype=m_ref.dtype)
        l_ref[...] = jnp.zeros(l_ref.shape, dtype=l_ref.dtype)

    z = z_ref[...]
    # Mask undefined rows of the ragged last block (num_rows is static).
    row = i * tile_b + jax.lax.broadcasted_iota(jnp.int32, z.shape, 0)
    z = jnp.where(row < num_rows, z, -jnp.inf)

    m_old = m_ref[...]
    m_new = jnp.maximum(m_old, jnp.max(z, axis=0, keepdims=True))
    l_ref[...] = (l_ref[...] * jnp.exp(m_old - m_new)
                  + jnp.sum(jnp.exp(z - m_new), axis=0, keepdims=True))
    m_ref[...] = m_new


def softmax_norm_kernel(z_ref, m_ref, l_ref, o_ref):
    """Pass 2 of the tiled softmax(dim=0): normalize each batch tile."""
    o_ref[...] = (jnp.exp(z_ref[...] - m_ref[...]) / l_ref[...]).astype(o_ref.dtype)


# ---------------------------------------------------------------------------
# Wrapper
# ---------------------------------------------------------------------------

@functools.partial(jax.jit, static_argnames=("max_tile_b",))
def policy_net_forward(x, params, max_tile_b=2048):
    """x: [B, num_states] float32; params: weights bf16 (via prepare_params), biases f32."""
    assert x.ndim == 2, "Softmax(dim=0) semantics implemented for 2-D [B, num_states] input"
    B, num_states = x.shape
    num_actions = params["w4"].shape[1]

    w1, w2, w3, w4 = params["w1"], params["w2"], params["w3"], params["w4"]
    b1, b2, b3, b4 = params["b1"], params["b2"], params["b3"], params["b4"]

    if B <= max_tile_b:
        # Single fused launch: whole problem lives in one VMEM block.
        vmem = pl.BlockSpec(memory_space=pltpu.MemorySpace.VMEM)
        return pl.pallas_call(
            policy_mlp_softmax_kernel,
            out_shape=jax.ShapeDtypeStruct((B, num_actions), jnp.float32),
            in_specs=[vmem] * 9,
            out_specs=vmem,
        )(x, w1, b1, w2, b2, w3, b3, w4, b4)

    # ---- Large-B path: batch-tiled MLP + tiled two-pass softmax(dim=0) ----
    # Cap the tile so n_tiles >= 2 (v7x: both TensorCores get work); keep it a
    # multiple of 16 for bf16 sublane packing. Ragged last block is fine: Pallas
    # masks boundary writes, and the softmax reduction masks the garbage rows.
    half = ((B + 1) // 2 + 15) // 16 * 16
    tile_b = min(max_tile_b, half)
    n_tiles = pl.cdiv(B, tile_b)

    resident = lambda i: (0, 0)  # weights/biases stay in VMEM across grid steps

    logits = pl.pallas_call(
        policy_mlp_kernel,
        out_shape=jax.ShapeDtypeStruct((B, num_actions), jnp.float32),
        grid=(n_tiles,),
        in_specs=[
            pl.BlockSpec((tile_b, num_states), lambda i: (i, 0)),   # x tile
            pl.BlockSpec((num_states, 128), resident),              # w1
            pl.BlockSpec((1, 128), resident),                       # b1
            pl.BlockSpec((128, 128), resident),                     # w2
            pl.BlockSpec((1, 128), resident),                       # b2
            pl.BlockSpec((128, 128), resident),                     # w3
            pl.BlockSpec((1, 128), resident),                       # b3
            pl.BlockSpec((128, num_actions), resident),             # w4
            pl.BlockSpec((1, num_actions), resident),               # b4
        ],
        out_specs=pl.BlockSpec((tile_b, num_actions), lambda i: (i, 0)),
        compiler_params=pltpu.CompilerParams(
            dimension_semantics=("parallel",)),
    )(x, w1, b1, w2, b2, w3, b3, w4, b4)

    # Pass 1: global per-column max / sum(exp) via an online accumulator.
    m_col, l_col = pl.pallas_call(
        functools.partial(softmax_colstats_kernel, num_rows=B, tile_b=tile_b),
        out_shape=(jax.ShapeDtypeStruct((1, num_actions), jnp.float32),
                   jax.ShapeDtypeStruct((1, num_actions), jnp.float32)),
        grid=(n_tiles,),
        in_specs=[pl.BlockSpec((tile_b, num_actions), lambda i: (i, 0))],
        out_specs=(pl.BlockSpec((1, num_actions), lambda i: (0, 0)),
                   pl.BlockSpec((1, num_actions), lambda i: (0, 0))),
        compiler_params=pltpu.CompilerParams(
            dimension_semantics=("arbitrary",)),
    )(logits)

    # Pass 2: tiled normalize.
    probs = pl.pallas_call(
        softmax_norm_kernel,
        out_shape=jax.ShapeDtypeStruct((B, num_actions), jnp.float32),
        grid=(n_tiles,),
        in_specs=[pl.BlockSpec((tile_b, num_actions), lambda i: (i, 0)),
                  pl.BlockSpec((1, num_actions), lambda i: (0, 0)),
                  pl.BlockSpec((1, num_actions), lambda i: (0, 0))],
        out_specs=pl.BlockSpec((tile_b, num_actions), lambda i: (i, 0)),
        compiler_params=pltpu.CompilerParams(
            dimension_semantics=("parallel",)),
    )(logits, m_col, l_col)
    return probs


# ---------------------------------------------------------------------------
# Parameters / reference
# ---------------------------------------------------------------------------

def init_params(num_states, num_actions, key):
    """Deterministic synthetic f32 parameters (shapes match PolicyNet.__init__)."""
    k1, k2, k3, k4 = jax.random.split(key, 4)
    # PyTorch Linear weight is [out, in]; we store the transpose [in, out].
    w1 = jax.random.normal(k1, (num_states, 128), jnp.float32) * 0.1
    b1 = jnp.zeros((1, 128), jnp.float32)
    w2 = jax.random.normal(k2, (128, 128), jnp.float32) * 0.1
    b2 = jnp.zeros((1, 128), jnp.float32)
    w3 = jax.random.normal(k3, (128, 128), jnp.float32) * 0.1
    b3 = jnp.zeros((1, 128), jnp.float32)
    w4 = jax.random.normal(k4, (128, num_actions), jnp.float32) * 0.1
    b4 = jnp.zeros((1, num_actions), jnp.float32)
    return dict(w1=w1, b1=b1, w2=w2, b2=b2, w3=w3, b3=b3, w4=w4, b4=b4)


def prepare_params(params):
    """One-time bf16 cast of the weight matrices (MXU operand dtype).

    Done ONCE outside the per-step forward path (review: avoid per-call weight
    casts and their HBM passes).  Biases stay f32.
    """
    p = dict(params)
    for k in ("w1", "w2", "w3", "w4"):
        p[k] = params[k].astype(jnp.bfloat16)
    return p


def policy_net_ref(x, p):
    """Pure-JAX f32 reference (matches PyTorch module, incl. Softmax(dim=0))."""
    h = jnp.maximum(x @ p["w1"] + p["b1"], 0.0)
    h = jnp.maximum(h @ p["w2"] + p["b2"], 0.0)
    h = jnp.maximum(h @ p["w3"] + p["b3"], 0.0)
    logits = h @ p["w4"] + p["b4"]
    return jax.nn.softmax(logits, axis=0)


if __name__ == "__main__":
    num_states = 32
    num_actions = 4
    batch = 8

    key = jax.random.PRNGKey(0)
    kx, kp = jax.random.split(key)
    x = jax.random.normal(kx, (batch, num_states), jnp.float32)
    params_f32 = init_params(num_states, num_actions, kp)
    params = prepare_params(params_f32)   # bf16 weights, once

    # --- Path 1: fused single-block kernel (the common small-B RL case) ---
    out = jax.block_until_ready(policy_net_forward(x, params))
    ref = policy_net_ref(x, params_f32)
    assert out.shape == (batch, num_actions), out.shape
    assert jnp.allclose(jnp.sum(out, axis=0), 1.0, atol=1e-3), jnp.sum(out, axis=0)
    assert jnp.allclose(out, ref, atol=2e-2, rtol=2e-2), (
        f"max abs diff {jnp.max(jnp.abs(out - ref))}"
    )

    # --- Path 2: batch-tiled MLP + tiled two-pass softmax, ragged last tile ---
    x2 = jax.random.normal(jax.random.PRNGKey(1), (40, num_states), jnp.float32)
    out2 = jax.block_until_ready(policy_net_forward(x2, params, max_tile_b=16))
    ref2 = policy_net_ref(x2, params_f32)
    assert out2.shape == (40, num_actions), out2.shape
    assert jnp.allclose(jnp.sum(out2, axis=0), 1.0, atol=1e-3), jnp.sum(out2, axis=0)
    assert jnp.allclose(out2, ref2, atol=2e-2, rtol=2e-2), (
        f"max abs diff {jnp.max(jnp.abs(out2 - ref2))}"
    )

    print("KERNEL_OK")
</pallas_src>

<mosaic_0001>
module attributes {stable_mosaic.version = 11 : i64} {
  func.func @policy_mlp_softmax_kernel(%arg0: memref<8x32xf32, #tpu.memory_space<vmem>>, %arg1: memref<32x128xbf16, #tpu.memory_space<vmem>>, %arg2: memref<1x128xf32, #tpu.memory_space<vmem>>, %arg3: memref<128x128xbf16, #tpu.memory_space<vmem>>, %arg4: memref<1x128xf32, #tpu.memory_space<vmem>>, %arg5: memref<128x128xbf16, #tpu.memory_space<vmem>>, %arg6: memref<1x128xf32, #tpu.memory_space<vmem>>, %arg7: memref<128x4xbf16, #tpu.memory_space<vmem>>, %arg8: memref<1x4xf32, #tpu.memory_space<vmem>>, %arg9: memref<8x4xf32, #tpu.memory_space<vmem>>) attributes {dimension_semantics = [], scalar_prefetch = 0 : i64, scratch_operands = 0 : i64, tpu.core_type = #tpu.core_type<tc>} {
    %c0 = arith.constant 0 : index
    %c0_0 = arith.constant 0 : index
    %0 = vector.load %arg0[%c0, %c0_0] : memref<8x32xf32, #tpu.memory_space<vmem>>, vector<8x32xf32>
    %1 = arith.truncf %0 : vector<8x32xf32> to vector<8x32xbf16>
    %c0_1 = arith.constant 0 : index
    %c0_2 = arith.constant 0 : index
    %2 = vector.load %arg1[%c0_1, %c0_2] : memref<32x128xbf16, #tpu.memory_space<vmem>>, vector<32x128xbf16>
    %cst = arith.constant dense<0.000000e+00> : vector<8x128xf32>
    %3 = tpu.matmul %1, %2, %cst {dimension_numbers = #tpu.dot_dimension_numbers<[1], [0], [0], [1], [0, 0, 1, 1], [], []>} : vector<8x32xbf16>, vector<32x128xbf16>, vector<8x128xf32> -> vector<8x128xf32>
    %c0_3 = arith.constant 0 : index
    %c0_4 = arith.constant 0 : index
    %4 = vector.load %arg2[%c0_3, %c0_4] : memref<1x128xf32, #tpu.memory_space<vmem>>, vector<1x128xf32>
    %5 = vector.broadcast %4 : vector<1x128xf32> to vector<8x128xf32>
    %6 = arith.addf %3, %5 : vector<8x128xf32>
    %cst_5 = arith.constant 0.000000e+00 : f32
    %7 = vector.broadcast %cst_5 : f32 to vector<8x128xf32>
    %8 = arith.maximumf %6, %7 : vector<8x128xf32>
    %9 = arith.truncf %8 : vector<8x128xf32> to vector<8x128xbf16>
    %c0_6 = arith.constant 0 : index
    %c0_7 = arith.constant 0 : index
    %10 = vector.load %arg3[%c0_6, %c0_7] : memref<128x128xbf16, #tpu.memory_space<vmem>>, vector<128x128xbf16>
    %cst_8 = arith.constant dense<0.000000e+00> : vector<8x128xf32>
    %11 = tpu.matmul %9, %10, %cst_8 {dimension_numbers = #tpu.dot_dimension_numbers<[1], [0], [0], [1], [0, 0, 1, 1], [], []>} : vector<8x128xbf16>, vector<128x128xbf16>, vector<8x128xf32> -> vector<8x128xf32>
    %c0_9 = arith.constant 0 : index
    %c0_10 = arith.constant 0 : index
    %12 = vector.load %arg4[%c0_9, %c0_10] : memref<1x128xf32, #tpu.memory_space<vmem>>, vector<1x128xf32>
    %13 = vector.broadcast %12 : vector<1x128xf32> to vector<8x128xf32>
    %14 = arith.addf %11, %13 : vector<8x128xf32>
    %cst_11 = arith.constant 0.000000e+00 : f32
    %15 = vector.broadcast %cst_11 : f32 to vector<8x128xf32>
    %16 = arith.maximumf %14, %15 : vector<8x128xf32>
    %17 = arith.truncf %16 : vector<8x128xf32> to vector<8x128xbf16>
    %c0_12 = arith.constant 0 : index
    %c0_13 = arith.constant 0 : index
    %18 = vector.load %arg5[%c0_12, %c0_13] : memref<128x128xbf16, #tpu.memory_space<vmem>>, vector<128x128xbf16>
    %cst_14 = arith.constant dense<0.000000e+00> : vector<8x128xf32>
    %19 = tpu.matmul %17, %18, %cst_14 {dimension_numbers = #tpu.dot_dimension_numbers<[1], [0], [0], [1], [0, 0, 1, 1], [], []>} : vector<8x128xbf16>, vector<128x128xbf16>, vector<8x128xf32> -> vector<8x128xf32>
    %c0_15 = arith.constant 0 : index
    %c0_16 = arith.constant 0 : index
    %20 = vector.load %arg6[%c0_15, %c0_16] : memref<1x128xf32, #tpu.memory_space<vmem>>, vector<1x128xf32>
    %21 = vector.broadcast %20 : vector<1x128xf32> to vector<8x128xf32>
    %22 = arith.addf %19, %21 : vector<8x128xf32>
    %cst_17 = arith.constant 0.000000e+00 : f32
    %23 = vector.broadcast %cst_17 : f32 to vector<8x128xf32>
    %24 = arith.maximumf %22, %23 : vector<8x128xf32>
    %25 = arith.truncf %24 : vector<8x128xf32> to vector<8x128xbf16>
    %c0_18 = arith.constant 0 : index
    %c0_19 = arith.constant 0 : index
    %26 = vector.load %arg7[%c0_18, %c0_19] : memref<128x4xbf16, #tpu.memory_space<vmem>>, vector<128x4xbf16>
    %cst_20 = arith.constant dense<0.000000e+00> : vector<8x4xf32>
    %27 = tpu.matmul %25, %26, %cst_20 {dimension_numbers = #tpu.dot_dimension_numbers<[1], [0], [0], [1], [0, 0, 1, 1], [], []>} : vector<8x128xbf16>, vector<128x4xbf16>, vector<8x4xf32> -> vector<8x4xf32>
    %c0_21 = arith.constant 0 : index
    %c0_22 = arith.constant 0 : index
    %28 = vector.load %arg8[%c0_21, %c0_22] : memref<1x4xf32, #tpu.memory_space<vmem>>, vector<1x4xf32>
    %29 = vector.broadcast %28 : vector<1x4xf32> to vector<8x4xf32>
    %30 = arith.addf %27, %29 : vector<8x4xf32>
    %cst_23 = arith.constant dense<0xFF800000> : vector<4xf32>
    %31 = vector.multi_reduction <maximumf>, %30, %cst_23 [0] : vector<8x4xf32> to vector<4xf32>
    %32 = vector.shape_cast %31 : vector<4xf32> to vector<1x4xf32>
    %33 = vector.broadcast %32 : vector<1x4xf32> to vector<8x4xf32>
    %34 = arith.subf %30, %33 : vector<8x4xf32>
    %35 = math.exp %34 : vector<8x4xf32>
    %cst_24 = arith.constant dense<0.000000e+00> : vector<4xf32>
    %36 = vector.multi_reduction <add>, %35, %cst_24 [0] : vector<8x4xf32> to vector<4xf32>
    %37 = vector.shape_cast %36 : vector<4xf32> to vector<1x4xf32>
    %38 = vector.broadcast %37 : vector<1x4xf32> to vector<8x4xf32>
    %39 = arith.divf %35, %38 : vector<8x4xf32>
    %c0_25 = arith.constant 0 : index
    %c0_26 = arith.constant 0 : index
    %40 = vector.load %arg9[%c0_25, %c0_26] : memref<8x4xf32, #tpu.memory_space<vmem>>, vector<8x4xf32>
    tpu.vector_store %arg9[%c0_25, %c0_26], %39 {strides = array<i32>} : memref<8x4xf32, #tpu.memory_space<vmem>>, vector<8x4xf32>,
    return
  }
}

</mosaic_0001>

<llo_original>
// kernel: policy_net_forward.1
$region0: #{policy_net_forward.1}
  #allocation0 [shape = 'u32[]', space=smem, size = 0x4, offset = 0x4, fixed_abs, tag = 'smem constant byte address 0x4 - core index']
  #allocation1 [shape = 'u32[144,128]{1,0:T(1,128)}', space=vmem, size = 0x12000, scoped, tag = 'internal scratch']
  %s0 = inlined_call_operand.vmem [shape: f32[8,32], index: 0, kind: input, shape index: {}]
  %s1 = inlined_call_operand.vmem [shape: bf16[32,128], index: 1, kind: input, shape index: {}]
  %s2 = inlined_call_operand.hbm [shape: f32[1,128], index: 2, kind: input, shape index: {}]
  %s3 = inlined_call_operand.vmem [shape: bf16[128,128], index: 3, kind: input, shape index: {}]
  %s4 = inlined_call_operand.hbm [shape: f32[1,128], index: 4, kind: input, shape index: {}]
  %s5 = inlined_call_operand.hbm [shape: bf16[128,128], index: 5, kind: input, shape index: {}]
  %s6 = inlined_call_operand.hbm [shape: f32[1,128], index: 6, kind: input, shape index: {}]
  %s7 = inlined_call_operand.vmem [shape: bf16[128,4], index: 7, kind: input, shape index: {}]
  %s8 = inlined_call_operand.hbm [shape: f32[1,4], index: 8, kind: input, shape index: {}]
  %s9 = inlined_call_operand.vmem [shape: f32[8,4], index: 9, kind: output, shape index: {}]
  %s10 = sld [smem:[#allocation0]]
  $region66: #{policy_net_forward.1} parent=0
    _
  %s12 = ssub.s32 1, %s10
  %s13 = scalar_select 0, %s12, %s10
  $region1: #{policy_net_forward.1} parent=0
    #allocation2 [shape = 'u8[512]{0}', space=vmem, size = 0x400, scoped, tag = 'input window, operand 2, single buffered']
    #allocation3 [shape = 's32[1]{0}', space=sflag, size = 0x4, scoped, tag = 'scoped memory for policy_net_forward.1']
    #allocation4 [shape = 'u8[512]{0}', space=vmem, size = 0x400, scoped, tag = 'input window, operand 4, single buffered']
    #allocation5 [shape = 's32[1]{0}', space=sflag, size = 0x4, scoped, tag = 'scoped memory for policy_net_forward.1']
    #allocation6 [shape = 'u8[32768]{0}', space=vmem, size = 0x8000, scoped, tag = 'input window, operand 5, single buffered']
    #allocation7 [shape = 'u8[512]{0}', space=vmem, size = 0x400, scoped, tag = 'input window, operand 6, single buffered']
    #allocation8 [shape = 's32[1]{0}', space=sflag, size = 0x4, scoped, tag = 'scoped memory for policy_net_forward.1']
    #allocation9 [shape = 'u8[512]{0}', space=vmem, size = 0x400, scoped, tag = 'input window, operand 8, single buffered']
    %14 = vsyncpa [#allocation3], 0
    %15 = vsyncpa [#allocation5], 0
    %16 = vsyncpa [#allocation8], 0
    // Predicated region
    $region2: #{policy_net_forward.1} parent=1 // pred_check
      _
    $region3: #{policy_net_forward.1} parent=1 // pred_check_branch
      %18 = sbr.rel (0) target = $region5
    $region4: #{policy_net_forward.1} parent=1 // pred_region
      _
    $region5: #{policy_net_forward.1} parent=1 // pred_fallthru
      _
    // Predicated region
    $region6: #{policy_net_forward.1} parent=1 // pred_check
      _
    $region7: #{policy_net_forward.1} parent=1 // pred_check_branch
      %20 = sbr.rel (0) target = $region9
    $region8: #{policy_net_forward.1} parent=1 // pred_region
      _
    $region9: #{policy_net_forward.1} parent=1 // pred_fallthru
      _
    // Predicated region
    $region10: #{policy_net_forward.1} parent=1 // pred_check
      _
    $region11: #{policy_net_forward.1} parent=1 // pred_check_branch
      %22 = sbr.rel (0) target = $region13
    $region12: #{policy_net_forward.1} parent=1 // pred_region
      %s24 = ssub.s32 16, 16
      %25 = vsyncadd [#allocation3], %s24
      %s27 = sshll.u32 [#allocation2], 4
      %s28 = int_to_ptr.vmem [resolvable:$true] %s27
      %30 = dma.hbm_to_vmem [thread:$0]  %s2, 16, %s28, [#allocation3]
    $region13: #{policy_net_forward.1} parent=1 // pred_fallthru
      _
    // Predicated region
    $region14: #{policy_net_forward.1} parent=1 // pred_check
      _
    $region15: #{policy_net_forward.1} parent=1 // pred_check_branch
      %32 = sbr.rel (0) target = $region17
    $region16: #{policy_net_forward.1} parent=1 // pred_region
      _
    $region17: #{policy_net_forward.1} parent=1 // pred_fallthru
      _
    // Predicated region
    $region18: #{policy_net_forward.1} parent=1 // pred_check
      _
    $region19: #{policy_net_forward.1} parent=1 // pred_check_branch
      %34 = sbr.rel (0) target = $region21
    $region20: #{policy_net_forward.1} parent=1 // pred_region
      %s36 = ssub.s32 16, 16
      %37 = vsyncadd [#allocation5], %s36
      %s39 = sshll.u32 [#allocation4], 4
      %s40 = int_to_ptr.vmem [resolvable:$true] %s39
      %42 = dma.hbm_to_vmem [thread:$0]  %s4, 16, %s40, [#allocation5]
    $region21: #{policy_net_forward.1} parent=1 // pred_fallthru
      _
    // Predicated region
    $region22: #{policy_net_forward.1} parent=1 // pred_check
      _
    $region23: #{policy_net_forward.1} parent=1 // pred_check_branch
      %44 = sbr.rel (0) target = $region25
    $region24: #{policy_net_forward.1} parent=1 // pred_region
      %s46 = ssub.s32 1024, 1024
      %47 = vsyncadd [#allocation5], %s46
      %s48 = sshll.u32 [#allocation6], 4
      %s49 = int_to_ptr.vmem [resolvable:$true] %s48
      %54 = dma.hbm_to_vmem [thread:$0]  %s5, 1024, %s49, [#allocation5], 64, 64, 4
    $region25: #{policy_net_forward.1} parent=1 // pred_fallthru
      _
    // Predicated region
    $region26: #{policy_net_forward.1} parent=1 // pred_check
      _
    $region27: #{policy_net_forward.1} parent=1 // pred_check_branch
      %56 = sbr.rel (0) target = $region29
    $region28: #{policy_net_forward.1} parent=1 // pred_region
      %s58 = ssub.s32 16, 16
      %59 = vsyncadd [#allocation8], %s58
      %s61 = sshll.u32 [#allocation7], 4
      %s62 = int_to_ptr.vmem [resolvable:$true] %s61
      %64 = dma.hbm_to_vmem [thread:$0]  %s6, 16, %s62, [#allocation8]
    $region29: #{policy_net_forward.1} parent=1 // pred_fallthru
      _
    // Predicated region
    $region30: #{policy_net_forward.1} parent=1 // pred_check
      _
    $region31: #{policy_net_forward.1} parent=1 // pred_check_branch
      %66 = sbr.rel (0) target = $region33
    $region32: #{policy_net_forward.1} parent=1 // pred_region
      _
    $region33: #{policy_net_forward.1} parent=1 // pred_fallthru
      _
    // Predicated region
    $region34: #{policy_net_forward.1} parent=1 // pred_check
      _
    $region35: #{policy_net_forward.1} parent=1 // pred_check_branch
      %68 = sbr.rel (0) target = $region37
    $region36: #{policy_net_forward.1} parent=1 // pred_region
      %s70 = ssub.s32 16, 16
      %71 = vsyncadd [#allocation8], %s70
      %s73 = sshll.u32 [#allocation9], 4
      %s74 = int_to_ptr.vmem [resolvable:$true] %s73
      %76 = dma.hbm_to_vmem [thread:$0]  %s8, 16, %s74, [#allocation8]
    $region37: #{policy_net_forward.1} parent=1 // pred_fallthru
      _
    // Predicated region
    $region38: #{policy_net_forward.1} parent=1 // pred_check
      _
    $region39: #{policy_net_forward.1} parent=1 // pred_check_branch
      %78 = sbr.rel (0) target = $region41
    $region40: #{policy_net_forward.1} parent=1 // pred_region
      %79 = dma.done [#allocation3], 16
    $region41: #{policy_net_forward.1} parent=1 // pred_fallthru
      _
    // Predicated region
    $region42: #{policy_net_forward.1} parent=1 // pred_check
      _
    $region43: #{policy_net_forward.1} parent=1 // pred_check_branch
      %81 = sbr.rel (0) target = $region45
    $region44: #{policy_net_forward.1} parent=1 // pred_region
      %82 = dma.done [#allocation5], 16
    $region45: #{policy_net_forward.1} parent=1 // pred_fallthru
      _
    // Predicated region
    $region46: #{policy_net_forward.1} parent=1 // pred_check
      _
    $region47: #{policy_net_forward.1} parent=1 // pred_check_branch
      %84 = sbr.rel (0) target = $region49
    $region48: #{policy_net_forward.1} parent=1 // pred_region
      %85 = dma.done [#allocation5], 1024
    $region49: #{policy_net_forward.1} parent=1 // pred_fallthru
      _
    // Predicated region
    $region50: #{policy_net_forward.1} parent=1 // pred_check
      _
    $region51: #{policy_net_forward.1} parent=1 // pred_check_branch
      %87 = sbr.rel (0) target = $region53
    $region52: #{policy_net_forward.1} parent=1 // pred_region
      %88 = dma.done [#allocation8], 16
    $region53: #{policy_net_forward.1} parent=1 // pred_fallthru
      _
    // Predicated region
    $region54: #{policy_net_forward.1} parent=1 // pred_check
      _
    $region55: #{policy_net_forward.1} parent=1 // pred_check_branch
      %90 = sbr.rel (0) target = $region57
    $region56: #{policy_net_forward.1} parent=1 // pred_region
      %91 = dma.done [#allocation8], 16
    $region57: #{policy_net_forward.1} parent=1 // pred_fallthru
      _
    %v93 = vld [vmem:[%s0] sm:$0xff]
    %v94 = vpack.c.bf16 %v93, %v93
    %v95 = vld [vmem:[%s1] sm:$0xf]
    %v96 = vld [vmem:[%s1 + $0x4] sm:$0xf]
    %v97 = vld [vmem:[%s1 + $0x8] sm:$0xf]
    %v98 = vld [vmem:[%s1 + $0xc] sm:$0xf]
    %v99 = vld [vmem:[#allocation2] sm:$0x1]
    %v101 = vlaneseq
    %v102 = vshrl.u32 %v101, 7
    %v103 = vsub.s32 0, %v102
    %v104 = vrot.slane %v99, %v103
    %v110 = vunpack.c.l.b16 %v95
    %v111 = vunpack.c.l.b16 %v96
    %v112 = vunpack.c.l.b16 %v97
    %v113 = vunpack.c.l.b16 %v98
    %v114 = vpack.c.b16 %v111, %v110
    %v115 = vpack.c.b16 %v113, %v112
    %vm118 = vcmask 261120
    %v120 = vsel %vm118, %v94, 0
    %122 = vmatprep.subr.bf16.mxu0 0
    %123 = vmatpush1.bf16.msra.mxu0 %v114
    %124 = vmatprep.subr.bf16.mxu0 0
    %125 = vmatpush1.bf16.msra.mxu0 %v115
    %126 = vmatprep.subr.bf16.mxu0 0
    %127 = vmatpush1.bf16.msra.mxu0 0
    %128 = vmatprep.subr.bf16.mxu0 0
    %129 = vmatpush1.bf16.msra.mxu0 0
    %130 = vmatprep.subr.bf16.mxu0 0
    %131 = vmatpush1.bf16.msra.mxu0 0
    %132 = vmatprep.subr.bf16.mxu0 0
    %133 = vmatpush1.bf16.msra.mxu0 0
    %134 = vmatprep.subr.bf16.mxu0 0
    %135 = vmatpush1.bf16.msra.mxu0 0
    %136 = vmatprep.subr.bf16.mxu0 0
    %137 = vmatpush1.bf16.msra.mxu0 0
    %138 = vmatprep.subr.bf16.mxu0 0
    %139 = vmatpush1.bf16.msra.mxu0 0
    %140 = vmatprep.subr.bf16.mxu0 0
    %141 = vmatpush1.bf16.msra.mxu0 0
    %142 = vmatprep.subr.bf16.mxu0 0
    %143 = vmatpush1.bf16.msra.mxu0 0
    %144 = vmatprep.subr.bf16.mxu0 0
    %145 = vmatpush1.bf16.msra.mxu0 0
    %146 = vmatprep.subr.bf16.mxu0 0
    %147 = vmatpush1.bf16.msra.mxu0 0
    %148 = vmatprep.subr.bf16.mxu0 0
    %149 = vmatpush1.bf16.msra.mxu0 0
    %150 = vmatprep.subr.bf16.mxu0 0
    %151 = vmatpush1.bf16.msra.mxu0 0
    %152 = vmatprep.subr.bf16.mxu0 0
    %153 = vmatpush1.bf16.msra.mxu0 0
    %154 = vmatprep.mubr.bf16.mxu0 0
    %155 = vmatmul.mubr.bf16.gmra.mrb[0].mxu0 %v120
    %v156 = vpop.f32.mrb[0].mxu0
    %v157 = vadd.f32 %v104, %v156
    %v158 = vpop.f32.mrb[0].mxu0
    %v159 = vpop.f32.mrb[0].mxu0
    %v160 = vpop.f32.mrb[0].mxu0
    %161 = vdwg.mxu0
    %v162 = vmax.f32 %v157, 0.0
    %v163 = vpack.c.bf16 %v162, %v162
    %v164 = vld [vmem:[%s3] sm:$0xf]
    %v165 = vld [vmem:[%s3 + $0x4] sm:$0xf]
    %v166 = vld [vmem:[%s3 + $0x8] sm:$0xf]
    %v167 = vld [vmem:[%s3 + $0xc] sm:$0xf]
    %v168 = vld [vmem:[%s3 + $0x10] sm:$0xf]
    %v169 = vld [vmem:[%s3 + $0x14] sm:$0xf]
    %v170 = vld [vmem:[%s3 + $0x18] sm:$0xf]
    %v171 = vld [vmem:[%s3 + $0x1c] sm:$0xf]
    %v172 = vld [vmem:[%s3 + $0x20] sm:$0xf]
    %v173 = vld [vmem:[%s3 + $0x24] sm:$0xf]
    %v174 = vld [vmem:[%s3 + $0x28] sm:$0xf]
    %v175 = vld [vmem:[%s3 + $0x2c] sm:$0xf]
    %v176 = vld [vmem:[%s3 + $0x30] sm:$0xf]
    %v177 = vld [vmem:[%s3 + $0x34] sm:$0xf]
    %v178 = vld [vmem:[%s3 + $0x38] sm:$0xf]
    %v179 = vld [vmem:[%s3 + $0x3c] sm:$0xf]
    %v180 = vld [vmem:[#allocation4] sm:$0x1]
    %v182 = vlaneseq
    %v183 = vshrl.u32 %v182, 7
    %v184 = vsub.s32 0, %v183
    %v185 = vrot.slane %v180, %v184
    %v203 = vunpack.c.l.b16 %v164
    %v204 = vunpack.c.l.b16 %v165
    %v205 = vunpack.c.l.b16 %v166
    %v206 = vunpack.c.l.b16 %v167
    %v207 = vunpack.c.l.b16 %v168
    %v208 = vunpack.c.l.b16 %v169
    %v209 = vunpack.c.l.b16 %v170
    %v210 = vunpack.c.l.b16 %v171
    %v211 = vunpack.c.l.b16 %v172
    %v212 = vunpack.c.l.b16 %v173
    %v213 = vunpack.c.l.b16 %v174
    %v214 = vunpack.c.l.b16 %v175
    %v215 = vunpack.c.l.b16 %v176
    %v216 = vunpack.c.l.b16 %v177
    %v217 = vunpack.c.l.b16 %v178
    %v218 = vunpack.c.l.b16 %v179
    %v219 = vpack.c.b16 %v204, %v203
    %v220 = vpack.c.b16 %v206, %v205
    %v221 = vpack.c.b16 %v208, %v207
    %v222 = vpack.c.b16 %v210, %v209
    %v223 = vpack.c.b16 %v212, %v211
    %v224 = vpack.c.b16 %v214, %v213
    %v225 = vpack.c.b16 %v216, %v215
    %v226 = vpack.c.b16 %v218, %v217
    %235 = vmatprep.subr.bf16.mxu0 0
    %236 = vmatpush1.bf16.msra.mxu0 %v219
    %237 = vmatprep.subr.bf16.mxu0 0
    %238 = vmatpush1.bf16.msra.mxu0 %v220
    %239 = vmatprep.subr.bf16.mxu0 0
    %240 = vmatpush1.bf16.msra.mxu0 %v221
    %241 = vmatprep.subr.bf16.mxu0 0
    %242 = vmatpush1.bf16.msra.mxu0 %v222
    %243 = vmatprep.subr.bf16.mxu0 0
    %244 = vmatpush1.bf16.msra.mxu0 %v223
    %245 = vmatprep.subr.bf16.mxu0 0
    %246 = vmatpush1.bf16.msra.mxu0 %v224
    %247 = vmatprep.subr.bf16.mxu0 0
    %248 = vmatpush1.bf16.msra.mxu0 %v225
    %249 = vmatprep.subr.bf16.mxu0 0
    %250 = vmatpush1.bf16.msra.mxu0 %v226
    %251 = vmatprep.subr.bf16.mxu0 0
    %252 = vmatpush1.bf16.msra.mxu0 0
    %253 = vmatprep.subr.bf16.mxu0 0
    %254 = vmatpush1.bf16.msra.mxu0 0
    %255 = vmatprep.subr.bf16.mxu0 0
    %256 = vmatpush1.bf16.msra.mxu0 0
    %257 = vmatprep.subr.bf16.mxu0 0
    %258 = vmatpush1.bf16.msra.mxu0 0
    %259 = vmatprep.subr.bf16.mxu0 0
    %260 = vmatpush1.bf16.msra.mxu0 0
    %261 = vmatprep.subr.bf16.mxu0 0
    %262 = vmatpush1.bf16.msra.mxu0 0
    %263 = vmatprep.subr.bf16.mxu0 0
    %264 = vmatpush1.bf16.msra.mxu0 0
    %265 = vmatprep.subr.bf16.mxu0 0
    %266 = vmatpush1.bf16.msra.mxu0 0
    %267 = vmatprep.mubr.bf16.mxu0 0
    %268 = vmatmul.mubr.bf16.gmra.mrb[0].mxu0 %v163
    %v269 = vpop.f32.mrb[0].mxu0
    %v270 = vadd.f32 %v185, %v269
    %v271 = vpop.f32.mrb[0].mxu0
    %v272 = vpop.f32.mrb[0].mxu0
    %v273 = vpop.f32.mrb[0].mxu0
    %274 = vdwg.mxu0
    %v275 = vmax.f32 %v270, 0.0
    %v276 = vpack.c.bf16 %v275, %v275
    %v277 = vld [vmem:[#allocation6] sm:$0xf]
    %v278 = vld [vmem:[#allocation6 + $0x4] sm:$0xf]
    %v279 = vld [vmem:[#allocation6 + $0x8] sm:$0xf]
    %v280 = vld [vmem:[#allocation6 + $0xc] sm:$0xf]
    %v281 = vld [vmem:[#allocation6 + $0x10] sm:$0xf]
    %v282 = vld [vmem:[#allocation6 + $0x14] sm:$0xf]
    %v283 = vld [vmem:[#allocation6 + $0x18] sm:$0xf]
    %v284 = vld [vmem:[#allocation6 + $0x1c] sm:$0xf]
    %v285 = vld [vmem:[#allocation6 + $0x20] sm:$0xf]
    %v286 = vld [vmem:[#allocation6 + $0x24] sm:$0xf]
    %v287 = vld [vmem:[#allocation6 + $0x28] sm:$0xf]
    %v288 = vld [vmem:[#allocation6 + $0x2c] sm:$0xf]
    %v289 = vld [vmem:[#allocation6 + $0x30] sm:$0xf]
    %v290 = vld [vmem:[#allocation6 + $0x34] sm:$0xf]
    %v291 = vld [vmem:[#allocation6 + $0x38] sm:$0xf]
    %v292 = vld [vmem:[#allocation6 + $0x3c] sm:$0xf]
    %v293 = vld [vmem:[#allocation7] sm:$0x1]
    %v295 = vlaneseq
    %v296 = vshrl.u32 %v295, 7
    %v297 = vsub.s32 0, %v296
    %v298 = vrot.slane %v293, %v297
    %v316 = vunpack.c.l.b16 %v277
    %v317 = vunpack.c.l.b16 %v278
    %v318 = vunpack.c.l.b16 %v279
    %v319 = vunpack.c.l.b16 %v280
    %v320 = vunpack.c.l.b16 %v281
    %v321 = vunpack.c.l.b16 %v282
    %v322 = vunpack.c.l.b16 %v283
    %v323 = vunpack.c.l.b16 %v284
    %v324 = vunpack.c.l.b16 %v285
    %v325 = vunpack.c.l.b16 %v286
    %v326 = vunpack.c.l.b16 %v287
    %v327 = vunpack.c.l.b16 %v288
    %v328 = vunpack.c.l.b16 %v289
    %v329 = vunpack.c.l.b16 %v290
    %v330 = vunpack.c.l.b16 %v291
    %v331 = vunpack.c.l.b16 %v292
    %v332 = vpack.c.b16 %v317, %v316
    %v333 = vpack.c.b16 %v319, %v318
    %v334 = vpack.c.b16 %v321, %v320
    %v335 = vpack.c.b16 %v323, %v322
    %v336 = vpack.c.b16 %v325, %v324
    %v337 = vpack.c.b16 %v327, %v326
    %v338 = vpack.c.b16 %v329, %v328
    %v339 = vpack.c.b16 %v331, %v330
    %348 = vmatprep.subr.bf16.mxu0 0
    %349 = vmatpush1.bf16.msra.mxu0 %v332
    %350 = vmatprep.subr.bf16.mxu0 0
    %351 = vmatpush1.bf16.msra.mxu0 %v333
    %352 = vmatprep.subr.bf16.mxu0 0
    %353 = vmatpush1.bf16.msra.mxu0 %v334
    %354 = vmatprep.subr.bf16.mxu0 0
    %355 = vmatpush1.bf16.msra.mxu0 %v335
    %356 = vmatprep.subr.bf16.mxu0 0
    %357 = vmatpush1.bf16.msra.mxu0 %v336
    %358 = vmatprep.subr.bf16.mxu0 0
    %359 = vmatpush1.bf16.msra.mxu0 %v337
    %360 = vmatprep.subr.bf16.mxu0 0
    %361 = vmatpush1.bf16.msra.mxu0 %v338
    %362 = vmatprep.subr.bf16.mxu0 0
    %363 = vmatpush1.bf16.msra.mxu0 %v339
    %364 = vmatprep.subr.bf16.mxu0 0
    %365 = vmatpush1.bf16.msra.mxu0 0
    %366 = vmatprep.subr.bf16.mxu0 0
    %367 = vmatpush1.bf16.msra.mxu0 0
    %368 = vmatprep.subr.bf16.mxu0 0
    %369 = vmatpush1.bf16.msra.mxu0 0
    %370 = vmatprep.subr.bf16.mxu0 0
    %371 = vmatpush1.bf16.msra.mxu0 0
    %372 = vmatprep.subr.bf16.mxu0 0
    %373 = vmatpush1.bf16.msra.mxu0 0
    %374 = vmatprep.subr.bf16.mxu0 0
    %375 = vmatpush1.bf16.msra.mxu0 0
    %376 = vmatprep.subr.bf16.mxu0 0
    %377 = vmatpush1.bf16.msra.mxu0 0
    %378 = vmatprep.subr.bf16.mxu0 0
    %379 = vmatpush1.bf16.msra.mxu0 0
    %380 = vmatprep.mubr.bf16.mxu0 0
    %381 = vmatmul.mubr.bf16.gmra.mrb[0].mxu0 %v276
    %v382 = vpop.f32.mrb[0].mxu0
    %v383 = vadd.f32 %v298, %v382
    %v384 = vpop.f32.mrb[0].mxu0
    %v385 = vpop.f32.mrb[0].mxu0
    %v386 = vpop.f32.mrb[0].mxu0
    %387 = vdwg.mxu0
    %v388 = vmax.f32 %v383, 0.0
    %v389 = vpack.c.bf16 %v388, %v388
    %v390 = vld [vmem:[%s7] sm:$0xf]
    %v391 = vld [vmem:[%s7 + $0x4] sm:$0xf]
    %v392 = vld [vmem:[%s7 + $0x8] sm:$0xf]
    %v393 = vld [vmem:[%s7 + $0xc] sm:$0xf]
    %v394 = vld [vmem:[%s7 + $0x10] sm:$0xf]
    %v395 = vld [vmem:[%s7 + $0x14] sm:$0xf]
    %v396 = vld [vmem:[%s7 + $0x18] sm:$0xf]
    %v397 = vld [vmem:[%s7 + $0x1c] sm:$0xf]
    %v398 = vld [vmem:[%s7 + $0x20] sm:$0xf]
    %v399 = vld [vmem:[%s7 + $0x24] sm:$0xf]
    %v400 = vld [vmem:[%s7 + $0x28] sm:$0xf]
    %v401 = vld [vmem:[%s7 + $0x2c] sm:$0xf]
    %v402 = vld [vmem:[%s7 + $0x30] sm:$0xf]
    %v403 = vld [vmem:[%s7 + $0x34] sm:$0xf]
    %v404 = vld [vmem:[%s7 + $0x38] sm:$0xf]
    %v405 = vld [vmem:[%s7 + $0x3c] sm:$0xf]
    %v406 = vld [vmem:[#allocation9] sm:$0x1]
    %v408 = vlaneseq
    %v409 = vshrl.u32 %v408, 7
    %v410 = vsub.s32 0, %v409
    %v411 = vrot.slane %v406, %v410
    %v429 = vunpack.c.l.b16 %v390
    %v430 = vunpack.c.l.b16 %v391
    %v431 = vunpack.c.l.b16 %v392
    %v432 = vunpack.c.l.b16 %v393
    %v433 = vunpack.c.l.b16 %v394
    %v434 = vunpack.c.l.b16 %v395
    %v435 = vunpack.c.l.b16 %v396
    %v436 = vunpack.c.l.b16 %v397
    %v437 = vunpack.c.l.b16 %v398
    %v438 = vunpack.c.l.b16 %v399
    %v439 = vunpack.c.l.b16 %v400
    %v440 = vunpack.c.l.b16 %v401
    %v441 = vunpack.c.l.b16 %v402
    %v442 = vunpack.c.l.b16 %v403
    %v443 = vunpack.c.l.b16 %v404
    %v444 = vunpack.c.l.b16 %v405
    %v445 = vpack.c.b16 %v430, %v429
    %v446 = vpack.c.b16 %v432, %v431
    %v447 = vpack.c.b16 %v434, %v433
    %v448 = vpack.c.b16 %v436, %v435
    %v449 = vpack.c.b16 %v438, %v437
    %v450 = vpack.c.b16 %v440, %v439
    %v451 = vpack.c.b16 %v442, %v441
    %v452 = vpack.c.b16 %v444, %v443
    %461 = vmatprep.subr.bf16.mxu0 0
    %462 = vmatpush1.bf16.msra.mxu0 %v445
    %463 = vmatprep.subr.bf16.mxu0 0
    %464 = vmatpush1.bf16.msra.mxu0 %v446
    %465 = vmatprep.subr.bf16.mxu0 0
    %466 = vmatpush1.bf16.msra.mxu0 %v447
    %467 = vmatprep.subr.bf16.mxu0 0
    %468 = vmatpush1.bf16.msra.mxu0 %v448
    %469 = vmatprep.subr.bf16.mxu0 0
    %470 = vmatpush1.bf16.msra.mxu0 %v449
    %471 = vmatprep.subr.bf16.mxu0 0
    %472 = vmatpush1.bf16.msra.mxu0 %v450
    %473 = vmatprep.subr.bf16.mxu0 0
    %474 = vmatpush1.bf16.msra.mxu0 %v451
    %475 = vmatprep.subr.bf16.mxu0 0
    %476 = vmatpush1.bf16.msra.mxu0 %v452
    %477 = vmatprep.subr.bf16.mxu0 0
    %478 = vmatpush1.bf16.msra.mxu0 0
    %479 = vmatprep.subr.bf16.mxu0 0
    %480 = vmatpush1.bf16.msra.mxu0 0
    %481 = vmatprep.subr.bf16.mxu0 0
    %482 = vmatpush1.bf16.msra.mxu0 0
    %483 = vmatprep.subr.bf16.mxu0 0
    %484 = vmatpush1.bf16.msra.mxu0 0
    %485 = vmatprep.subr.bf16.mxu0 0
    %486 = vmatpush1.bf16.msra.mxu0 0
    %487 = vmatprep.subr.bf16.mxu0 0
    %488 = vmatpush1.bf16.msra.mxu0 0
    %489 = vmatprep.subr.bf16.mxu0 0
    %490 = vmatpush1.bf16.msra.mxu0 0
    %491 = vmatprep.subr.bf16.mxu0 0
    %492 = vmatpush1.bf16.msra.mxu0 0
    %493 = vmatprep.mubr.bf16.mxu0 0
    %494 = vmatmul.mubr.bf16.gmra.mrb[0].mxu0 %v389
    %v495 = vpop.f32.mrb[0].mxu0
    %v496 = vadd.f32 %v411, %v495
    %v497 = vpop.f32.mrb[0].mxu0
    %v498 = vpop.f32.mrb[0].mxu0
    %v499 = vpop.f32.mrb[0].mxu0
    %500 = vdwg.mxu0
    %vm501 = vcmask 31744
    %v502 = vsel %vm501, %v496, -inf
    %v503 = vrot.slane %v502, 4
    %v504 = vmax.f32 %v502, %v503
    %v505 = vrot.slane %v504, 2
    %v506 = vmax.f32 %v504, %v505
    %v507 = vrot.slane %v506, 1
    %v508 = vmax.f32 %v506, %v507
    %v509 = vsub.f32 %v496, %v508
    %v510 = vmul.f32 %v509, 1.442695
    %v511 = vpow.pop %v510
    %v512 = vsel %vm501, %v511, 0.0
    %v513 = vrot.slane %v512, 4
    %v514 = vadd.f32 %v512, %v513
    %v515 = vrot.slane %v514, 2
    %v516 = vadd.f32 %v514, %v515
    %v517 = vrot.slane %v516, 1
    %v518 = vadd.f32 %v516, %v517
    %v519 = vrcp.pop %v518
    %v520 = vmul.f32 %v511, %v519
    %521 = vst.msk [vmem:[%s9] sm:$0xff] %vm501, %v520
    // Predicated region
    $region58: #{policy_net_forward.1} parent=1 // pred_check
      _
    $region59: #{policy_net_forward.1} parent=1 // pred_check_branch
      %523 = sbr.rel (0) target = $region61
    $region60: #{policy_net_forward.1} parent=1 // pred_region
      _
    $region61: #{policy_net_forward.1} parent=1 // pred_fallthru
      _
    // Predicated region
    $region62: #{policy_net_forward.1} parent=1 // pred_check
      _
    $region63: #{policy_net_forward.1} parent=1 // pred_check_branch
      %525 = sbr.rel (0) target = $region65
    $region64: #{policy_net_forward.1} parent=1 // pred_region
      _
    $region65: #{policy_net_forward.1} parent=1 // pred_fallthru
      _
    %526 = vsyncpa [#allocation3], 1
    %527 = vsyncpa [#allocation5], 1
    %528 = vsyncpa [#allocation8], 1

</llo_original>
